<compile_context>
chip_gen: v7x
topology: tpu7x:2x2x1
jax: 0.10.0
libtpu: 0.0.40
codegen_flags: <defaults>
</compile_context>

<pallas_src>
import functools
import math

import numpy as np
import jax
import jax.numpy as jnp
from jax.experimental import pallas as pl
from jax.experimental.pallas import tpu as pltpu


# ----------------------- sin-cos embeddings (host-side, numpy) -----------------
def get_1d_sincos_pos_embed_from_grid(embed_dim, pos):
    assert embed_dim % 2 == 0
    omega = np.arange(embed_dim // 2, dtype=np.float32)
    omega /= embed_dim / 2.0
    omega = 1.0 / 10000 ** omega
    pos = pos.reshape(-1)
    out = np.einsum("m,d->md", pos, omega)
    return np.concatenate([np.sin(out), np.cos(out)], axis=1)


def get_2d_sincos_pos_embed_from_grid(embed_dim, grid):
    assert embed_dim % 2 == 0
    emb_h = get_1d_sincos_pos_embed_from_grid(embed_dim // 2, grid[0])
    emb_w = get_1d_sincos_pos_embed_from_grid(embed_dim // 2, grid[1])
    return np.concatenate([emb_h, emb_w], axis=1)


def get_2d_sincos_pos_embed(embed_dim, grid_size_h, grid_size_w):
    grid_h = np.arange(grid_size_h, dtype=np.float32)
    grid_w = np.arange(grid_size_w, dtype=np.float32)
    grid = np.meshgrid(grid_w, grid_h)
    grid = np.stack(grid, axis=0).reshape([2, 1, grid_size_h, grid_size_w])
    return get_2d_sincos_pos_embed_from_grid(embed_dim, grid)


# ----------------------------- Pallas kernel ------------------------------------
def fused_tokenize_kernel(p_ref, w_ref, posc_ref, gw_ref, gb_ref, o_ref):
    # p_ref:   (TB, TL, V*PP) bf16  patch pixels for a (batch-tile, L-tile)
    # w_ref:   (V*PP, D)      bf16  stacked per-variable weights, pre-scaled 1/V
    # posc_ref:(TL, D)        f32   pos_embed slice with mean(bias+chan_emb) folded in
    # gw/gb:   (1, D)         f32   LayerNorm gamma / beta
    # o_ref:   (TB, TL, D)    out_dtype (bf16 by default)
    TB, TL, VPP = p_ref.shape
    D = w_ref.shape[-1]
    # Fill the MXU M dimension with TB*TL rows (single matmul, f32 accumulation).
    p = p_ref[...].reshape(TB * TL, VPP)
    acc = jnp.dot(p, w_ref[...], preferred_element_type=jnp.float32)
    x = acc.reshape(TB, TL, D) + posc_ref[...]          # + pos + mean(bias+ce)
    # pos_drop: identity at eval.  LayerNorm(eps=1e-5) epilogue in f32:
    mu = jnp.mean(x, axis=-1, keepdims=True)
    var = jnp.mean(jnp.square(x - mu), axis=-1, keepdims=True)
    xn = (x - mu) * jax.lax.rsqrt(var + 1e-5)
    o_ref[...] = (xn * gw_ref[...] + gb_ref[...]).astype(o_ref.dtype)


# ------------------------------ tile selection -----------------------------------
def _choose_tiles(B, L, VPP, D, in_bs, out_bs, *,
                  target_rows=512, vmem_budget=32 * 1024 * 1024):
    """Pick (TB, TL) so TB*TL ~ target_rows (fill MXU M) and the
    double-buffered working set stays within `vmem_budget`."""
    l_divs = [d for d in range(1, L + 1) if L % d == 0]
    # Legal L-tiles under the (8,128) rule: multiple of 8, or the full dim.
    legal_tl = sorted({d for d in l_divs if d % 8 == 0} | {L})
    b_divs = [d for d in range(1, B + 1) if B % d == 0]

    def footprint(tb, tl):
        return (2 * tb * tl * VPP * in_bs          # patches (double-buffered)
                + 2 * tb * tl * D * out_bs         # output  (double-buffered)
                + 2 * tl * D * 4                   # posc f32 (double-buffered)
                + 2 * VPP * D * in_bs              # weights  (double-buffered)
                + 4 * D * 4)                       # LN gamma/beta

    pref = ([d for d in legal_tl if d <= target_rows and d % 16 == 0]
            or [d for d in legal_tl if d <= target_rows]
            or [min(legal_tl)])
    TL = max(pref)
    TB = max([d for d in b_divs if d * TL <= target_rows] or [1])
    # Shrink (batch first, then L) until the working set fits the budget.
    while footprint(TB, TL) > vmem_budget and TB > 1:
        TB = max(d for d in b_divs if d < TB)
    while footprint(TB, TL) > vmem_budget and TL > min(legal_tl):
        TL = max(d for d in legal_tl if d < TL)
    return TB, TL, footprint(TB, TL)


# ------------------------------- wrapper ----------------------------------------
@functools.partial(jax.jit,
                   static_argnames=("patch_size", "compute_dtype", "out_dtype"))
def tokenized_base_forward(x, weights, biases, channel_embed, pos_embed,
                           ln_w, ln_b, *, patch_size,
                           compute_dtype=jnp.bfloat16, out_dtype=jnp.bfloat16):
    """x: (B, V, H, W) float32. Returns tokens (B, L, D) in `out_dtype`."""
    B, V, H, W = x.shape
    P = patch_size
    Hp, Wp = H // P, W // P
    L = Hp * Wp
    PP = P * P
    D = weights.shape[-1]
    VPP = V * PP

    # --- patchify: cast to bf16 FIRST (elementwise => identical result), then
    # one fused reshape/transpose under jit: (B,V,H,W) -> (B, L, V*PP).
    patches = (x.astype(compute_dtype)
                 .reshape(B, V, Hp, P, Wp, P)
                 .transpose(0, 2, 4, 1, 3, 5)
                 .reshape(B, L, VPP))

    # Stack per-variable weights along the contraction dim, fold 1/V (in f32,
    # scale-invariant relative error) before the bf16 cast; pre-add the
    # mean(bias + channel_embed) constant into the f32 positional embedding.
    w_flat = (weights.reshape(VPP, D) * (1.0 / V)).astype(compute_dtype)
    const = jnp.mean(biases + channel_embed, axis=0)                  # (D,)
    posc = (pos_embed.astype(jnp.float32) + const[None, :])           # (L, D)
    gamma = ln_w.astype(jnp.float32)
    beta = ln_b.astype(jnp.float32)

    in_bs = jnp.dtype(compute_dtype).itemsize
    out_bs = jnp.dtype(out_dtype).itemsize
    TB, TL, vmem_needed = _choose_tiles(B, L, VPP, D, in_bs, out_bs)
    grid = (L // TL, B // TB)          # batch innermost -> pos tile not re-DMA'd

    vmem_limit = int(min(max(1.4 * vmem_needed, 4 * 1024 * 1024),
                         48 * 1024 * 1024))
    vmem_limit = max(vmem_limit, vmem_needed + (1 << 20))

    flops = 2 * B * L * VPP * D
    bytes_accessed = (B * L * VPP * in_bs          # patches (read once)
                      + VPP * D * in_bs            # weights
                      + L * D * 4                  # pos+const (read once)
                      + 2 * D * 4                  # LN params
                      + B * L * D * out_bs)        # output

    out = pl.pallas_call(
        fused_tokenize_kernel,
        out_shape=jax.ShapeDtypeStruct((B, L, D), out_dtype),
        grid=grid,
        in_specs=[
            pl.BlockSpec((TB, TL, VPP), lambda l, b: (b, l, 0)),   # patches
            pl.BlockSpec((VPP, D), lambda l, b: (0, 0)),           # stacked weights
            pl.BlockSpec((TL, D), lambda l, b: (l, 0)),            # pos + const
            pl.BlockSpec((1, D), lambda l, b: (0, 0)),             # LN gamma
            pl.BlockSpec((1, D), lambda l, b: (0, 0)),             # LN beta
        ],
        out_specs=pl.BlockSpec((TB, TL, D), lambda l, b: (b, l, 0)),
        compiler_params=pltpu.CompilerParams(
            dimension_semantics=("parallel", "parallel"),
            vmem_limit_bytes=vmem_limit),
        cost_estimate=pl.CostEstimate(
            flops=flops, transcendentals=B * L, bytes_accessed=bytes_accessed),
    )(patches, w_flat, posc, gamma, beta)

    return out


# ------------------------------ references (pure JAX) ----------------------------
def reference_forward_original(x, weights, biases, channel_embed, pos_embed,
                               ln_w, ln_b, patch_size):
    """Original-module structure (per-variable embed, +channel, mean, +pos, LN), f32."""
    B, V, H, W = x.shape
    P = patch_size
    Hp, Wp = H // P, W // P
    L = Hp * Wp
    xp = (x.reshape(B, V, Hp, P, Wp, P)
            .transpose(0, 1, 2, 4, 3, 5)
            .reshape(B, V, L, P * P))
    tok = jnp.einsum("bvlp,vpd->bvld", xp, weights) + biases[None, :, None, :]
    tok = tok + channel_embed[None, :, None, :]
    xagg = jnp.mean(tok, axis=1) + pos_embed[None]
    mu = jnp.mean(xagg, axis=-1, keepdims=True)
    var = jnp.mean(jnp.square(xagg - mu), axis=-1, keepdims=True)
    return ((xagg - mu) * jax.lax.rsqrt(var + 1e-5)) * ln_w[0] + ln_b[0]


def reference_forward_fused(x, weights, biases, channel_embed, pos_embed,
                            ln_w, ln_b, patch_size,
                            compute_dtype=jnp.bfloat16, out_dtype=jnp.bfloat16):
    """Same fused math as the kernel (bf16 matmul / f32 accum / bf16 store)."""
    B, V, H, W = x.shape
    P = patch_size
    Hp, Wp = H // P, W // P
    L = Hp * Wp
    VPP = V * P * P
    D = weights.shape[-1]
    patches = (x.astype(compute_dtype)
                 .reshape(B, V, Hp, P, Wp, P)
                 .transpose(0, 2, 4, 1, 3, 5)
                 .reshape(B, L, VPP))
    w_flat = (weights.reshape(VPP, D) * (1.0 / V)).astype(compute_dtype)
    acc = jnp.einsum("blk,kd->bld", patches, w_flat,
                     preferred_element_type=jnp.float32)
    const = jnp.mean(biases + channel_embed, axis=0)
    xagg = acc + const[None, None, :] + pos_embed[None]
    mu = jnp.mean(xagg, axis=-1, keepdims=True)
    var = jnp.mean(jnp.square(xagg - mu), axis=-1, keepdims=True)
    y = ((xagg - mu) * jax.lax.rsqrt(var + 1e-5)) * ln_w[0] + ln_b[0]
    return y.astype(out_dtype).astype(jnp.float32)


# ----------------------------------- main ----------------------------------------
if __name__ == "__main__":
    # Small config consistent with the module.
    img_size = [32, 32]
    patch_size = 8
    embed_dim = 128            # divisible by 4 (2D sin-cos) and lane-aligned
    in_vars = ["pr", "tas"]    # V = 2
    B = 2
    V = len(in_vars)
    H, W = img_size
    Hp, Wp = H // patch_size, W // patch_size
    L = Hp * Wp
    PP = patch_size * patch_size

    key = jax.random.PRNGKey(0)
    kx, kw, kb = jax.random.split(key, 3)

    # Input (B, V, H, W) -- climate variables as channels.
    x = jax.random.normal(kx, (B, V, H, W), dtype=jnp.float32)

    # Per-variable PatchEmbed conv weights, xavier_uniform on the (D, P*P) view,
    # as in initialize_weights(); bias small values (conv default-ish).
    limit = math.sqrt(6.0 / (embed_dim + PP))
    weights = jax.random.uniform(
        kw, (V, PP, embed_dim), minval=-limit, maxval=limit, dtype=jnp.float32)
    bound = 1.0 / math.sqrt(PP)
    biases = jax.random.uniform(
        kb, (V, embed_dim), minval=-bound, maxval=bound, dtype=jnp.float32)

    # Fixed (non-learnable) sin-cos positional and channel embeddings.
    pos_embed = jnp.asarray(
        get_2d_sincos_pos_embed(embed_dim, Hp, Wp), dtype=jnp.float32)        # (L, D)
    channel_embed = jnp.asarray(
        get_1d_sincos_pos_embed_from_grid(embed_dim, np.arange(V, dtype=np.float32)),
        dtype=jnp.float32)                                                     # (V, D)

    # Final LayerNorm params (init: weight=1, bias=0), kept 2-D for layout.
    ln_w = jnp.ones((1, embed_dim), dtype=jnp.float32)
    ln_b = jnp.zeros((1, embed_dim), dtype=jnp.float32)

    out = tokenized_base_forward(
        x, weights, biases, channel_embed, pos_embed, ln_w, ln_b,
        patch_size=patch_size)
    out = jax.block_until_ready(out)
    assert out.shape == (B, L, embed_dim)
    assert out.dtype == jnp.bfloat16
    out_f32 = np.asarray(out.astype(jnp.float32))

    # Tight check vs. the numerically-equivalent fused reference
    # (same bf16 matmul / bf16 output cast).
    ref_fused = reference_forward_fused(
        x, weights, biases, channel_embed, pos_embed, ln_w, ln_b, patch_size)
    np.testing.assert_allclose(out_f32, np.asarray(ref_fused),
                               rtol=2e-2, atol=2e-2)

    # Semantic check vs. the original per-variable f32 structure (bf16 tolerance).
    ref_orig = reference_forward_original(
        x, weights, biases, channel_embed, pos_embed, ln_w, ln_b, patch_size)
    np.testing.assert_allclose(out_f32, np.asarray(ref_orig),
                               rtol=4e-2, atol=4e-2)

    print("KERNEL_OK")
</pallas_src>

<mosaic_0001>
module attributes {stable_mosaic.version = 11 : i64} {
  func.func @fused_tokenize_kernel(%arg0: i32, %arg1: i32, %arg2: memref<2x16x128xbf16, #tpu.memory_space<vmem>>, %arg3: memref<128x128xbf16, #tpu.memory_space<vmem>>, %arg4: memref<16x128xf32, #tpu.memory_space<vmem>>, %arg5: memref<1x128xf32, #tpu.memory_space<vmem>>, %arg6: memref<1x128xf32, #tpu.memory_space<vmem>>, %arg7: memref<2x16x128xbf16, #tpu.memory_space<vmem>>) attributes {dimension_semantics = [#tpu.dimension_semantics<parallel>, #tpu.dimension_semantics<parallel>], iteration_bounds = array<i64: 1, 1>, scalar_prefetch = 0 : i64, scratch_operands = 0 : i64, tpu.core_type = #tpu.core_type<tc>, window_params = [{transform_indices = @transform_0, window_bounds = array<i64: 2, 16, 128>}, {pipeline_mode = #tpu.pipeline_mode<synchronous>, transform_indices = @transform_1, window_bounds = array<i64: 128, 128>}, {transform_indices = @transform_2, window_bounds = array<i64: 16, 128>}, {pipeline_mode = #tpu.pipeline_mode<synchronous>, transform_indices = @transform_3, window_bounds = array<i64: 1, 128>}, {pipeline_mode = #tpu.pipeline_mode<synchronous>, transform_indices = @transform_4, window_bounds = array<i64: 1, 128>}, {transform_indices = @transform_5, window_bounds = array<i64: 2, 16, 128>}]} {
    %c0 = arith.constant 0 : index
    %c0_0 = arith.constant 0 : index
    %c0_1 = arith.constant 0 : index
    %0 = vector.load %arg2[%c0, %c0_0, %c0_1] : memref<2x16x128xbf16, #tpu.memory_space<vmem>>, vector<2x16x128xbf16>
    %1 = vector.shape_cast %0 : vector<2x16x128xbf16> to vector<32x128xbf16>
    %c0_2 = arith.constant 0 : index
    %c0_3 = arith.constant 0 : index
    %2 = vector.load %arg3[%c0_2, %c0_3] : memref<128x128xbf16, #tpu.memory_space<vmem>>, vector<128x128xbf16>
    %cst = arith.constant dense<0.000000e+00> : vector<32x128xf32>
    %3 = tpu.matmul %1, %2, %cst {dimension_numbers = #tpu.dot_dimension_numbers<[1], [0], [0], [1], [0, 0, 1, 1], [], []>} : vector<32x128xbf16>, vector<128x128xbf16>, vector<32x128xf32> -> vector<32x128xf32>
    %4 = vector.shape_cast %3 : vector<32x128xf32> to vector<2x16x128xf32>
    %c0_4 = arith.constant 0 : index
    %c0_5 = arith.constant 0 : index
    %5 = vector.load %arg4[%c0_4, %c0_5] : memref<16x128xf32, #tpu.memory_space<vmem>>, vector<16x128xf32>
    %6 = vector.shape_cast %5 : vector<16x128xf32> to vector<1x16x128xf32>
    %7 = vector.broadcast %6 : vector<1x16x128xf32> to vector<2x16x128xf32>
    %8 = arith.addf %4, %7 : vector<2x16x128xf32>
    %cst_6 = arith.constant dense<0.000000e+00> : vector<2x16xf32>
    %9 = vector.multi_reduction <add>, %8, %cst_6 [2] : vector<2x16x128xf32> to vector<2x16xf32>
    %10 = vector.shape_cast %9 : vector<2x16xf32> to vector<2x16x1xf32>
    %cst_7 = arith.constant 1.280000e+02 : f32
    %11 = vector.broadcast %cst_7 : f32 to vector<2x16x1xf32>
    %12 = arith.divf %10, %11 : vector<2x16x1xf32>
    %13 = vector.broadcast %12 : vector<2x16x1xf32> to vector<2x16x128xf32>
    %14 = arith.subf %8, %13 : vector<2x16x128xf32>
    %15 = arith.mulf %14, %14 : vector<2x16x128xf32>
    %cst_8 = arith.constant dense<0.000000e+00> : vector<2x16xf32>
    %16 = vector.multi_reduction <add>, %15, %cst_8 [2] : vector<2x16x128xf32> to vector<2x16xf32>
    %17 = vector.shape_cast %16 : vector<2x16xf32> to vector<2x16x1xf32>
    %cst_9 = arith.constant 1.280000e+02 : f32
    %18 = vector.broadcast %cst_9 : f32 to vector<2x16x1xf32>
    %19 = arith.divf %17, %18 : vector<2x16x1xf32>
    %20 = vector.broadcast %12 : vector<2x16x1xf32> to vector<2x16x128xf32>
    %21 = arith.subf %8, %20 : vector<2x16x128xf32>
    %cst_10 = arith.constant 9.99999974E-6 : f32
    %22 = vector.broadcast %cst_10 : f32 to vector<2x16x1xf32>
    %23 = arith.addf %19, %22 : vector<2x16x1xf32>
    %24 = math.rsqrt %23 : vector<2x16x1xf32>
    %25 = vector.broadcast %24 : vector<2x16x1xf32> to vector<2x16x128xf32>
    %26 = arith.mulf %21, %25 : vector<2x16x128xf32>
    %c0_11 = arith.constant 0 : index
    %c0_12 = arith.constant 0 : index
    %27 = vector.load %arg5[%c0_11, %c0_12] : memref<1x128xf32, #tpu.memory_space<vmem>>, vector<1x128xf32>
    %28 = vector.shape_cast %27 : vector<1x128xf32> to vector<1x1x128xf32>
    %29 = vector.broadcast %28 : vector<1x1x128xf32> to vector<2x16x128xf32>
    %30 = arith.mulf %26, %29 : vector<2x16x128xf32>
    %c0_13 = arith.constant 0 : index
    %c0_14 = arith.constant 0 : index
    %31 = vector.load %arg6[%c0_13, %c0_14] : memref<1x128xf32, #tpu.memory_space<vmem>>, vector<1x128xf32>
    %32 = vector.shape_cast %31 : vector<1x128xf32> to vector<1x1x128xf32>
    %33 = vector.broadcast %32 : vector<1x1x128xf32> to vector<2x16x128xf32>
    %34 = arith.addf %30, %33 : vector<2x16x128xf32>
    %35 = arith.truncf %34 : vector<2x16x128xf32> to vector<2x16x128xbf16>
    %c0_15 = arith.constant 0 : index
    %c0_16 = arith.constant 0 : index
    %c0_17 = arith.constant 0 : index
    %36 = vector.load %arg7[%c0_15, %c0_16, %c0_17] : memref<2x16x128xbf16, #tpu.memory_space<vmem>>, vector<2x16x128xbf16>
    tpu.vector_store %arg7[%c0_15, %c0_16, %c0_17], %35 {strides = array<i32>} : memref<2x16x128xbf16, #tpu.memory_space<vmem>>, vector<2x16x128xbf16>,
    return
  }
  func.func @transform_0(%arg0: i32, %arg1: i32) -> (i32, i32, i32) {
    %c0_i32 = arith.constant 0 : i32
    %c0_i32_0 = arith.constant 0 : i32
    return %arg1, %arg0, %c0_i32 : i32, i32, i32
  }
  func.func @transform_1(%arg0: i32, %arg1: i32) -> (i32, i32) {
    %c0_i32 = arith.constant 0 : i32
    %c0_i32_0 = arith.constant 0 : i32
    %c0_i32_1 = arith.constant 0 : i32
    return %c0_i32, %c0_i32_0 : i32, i32
  }
  func.func @transform_2(%arg0: i32, %arg1: i32) -> (i32, i32) {
    %c0_i32 = arith.constant 0 : i32
    %c0_i32_0 = arith.constant 0 : i32
    return %arg0, %c0_i32 : i32, i32
  }
  func.func @transform_3(%arg0: i32, %arg1: i32) -> (i32, i32) {
    %c0_i32 = arith.constant 0 : i32
    %c0_i32_0 = arith.constant 0 : i32
    %c0_i32_1 = arith.constant 0 : i32
    return %c0_i32, %c0_i32_0 : i32, i32
  }
  func.func @transform_4(%arg0: i32, %arg1: i32) -> (i32, i32) {
    %c0_i32 = arith.constant 0 : i32
    %c0_i32_0 = arith.constant 0 : i32
    %c0_i32_1 = arith.constant 0 : i32
    return %c0_i32, %c0_i32_0 : i32, i32
  }
  func.func @transform_5(%arg0: i32, %arg1: i32) -> (i32, i32, i32) {
    %c0_i32 = arith.constant 0 : i32
    %c0_i32_0 = arith.constant 0 : i32
    return %arg1, %arg0, %c0_i32 : i32, i32, i32
  }
}

</mosaic_0001>

<llo_original>
// kernel: tokenized_base_forward.1
$region0: #{tokenized_base_forward.1}
  #allocation0 [shape = 'u32[]', space=smem, size = 0x4, offset = 0x4, fixed_abs, tag = 'smem constant byte address 0x4 - core index']
  #allocation1 [shape = 'u32[144,128]{1,0:T(1,128)}', space=vmem, size = 0x12000, scoped, tag = 'internal scratch']
  %s0 = inlined_call_operand.vmem [shape: bf16[2,16,128], index: 0, kind: input, shape index: {}]
  %s1 = inlined_call_operand.vmem [shape: bf16[128,128], index: 1, kind: input, shape index: {}]
  %s2 = inlined_call_operand.vmem [shape: f32[16,128], index: 2, kind: input, shape index: {}]
  %s3 = inlined_call_operand.vmem [shape: f32[1,128], index: 3, kind: input, shape index: {}]
  %s4 = inlined_call_operand.vmem [shape: f32[1,128], index: 4, kind: input, shape index: {}]
  %s5 = inlined_call_operand.hbm [shape: bf16[2,16,128], index: 5, kind: output, shape index: {}]
  %s6 = sld [smem:[#allocation0]]
  $region30: #{tokenized_base_forward.1} parent=0
    _
  %s8 = ssub.s32 1, %s6
  %s9 = scalar_select 0, %s8, %s6
  $region1: #{tokenized_base_forward.1} parent=0
    #allocation2 [shape = 'u8[8192]{0}', space=vmem, size = 0x2000, scoped, tag = 'output window, operand 0, single buffered']
    #allocation3 [shape = 's32[1]{0}', space=sflag, size = 0x4, scoped, tag = 'scoped memory for tokenized_base_forward.1']
    %10 = vsyncpa [#allocation3], 0
    // Predicated region
    $region2: #{tokenized_base_forward.1} parent=1 // pred_check
      _
    $region3: #{tokenized_base_forward.1} parent=1 // pred_check_branch
      %12 = sbr.rel (0) target = $region5
    $region4: #{tokenized_base_forward.1} parent=1 // pred_region
      _
    $region5: #{tokenized_base_forward.1} parent=1 // pred_fallthru
      _
    // Predicated region
    $region6: #{tokenized_base_forward.1} parent=1 // pred_check
      _
    $region7: #{tokenized_base_forward.1} parent=1 // pred_check_branch
      %14 = sbr.rel (0) target = $region9
    $region8: #{tokenized_base_forward.1} parent=1 // pred_region
      _
    $region9: #{tokenized_base_forward.1} parent=1 // pred_fallthru
      _
    // Predicated region
    $region10: #{tokenized_base_forward.1} parent=1 // pred_check
      _
    $region11: #{tokenized_base_forward.1} parent=1 // pred_check_branch
      %16 = sbr.rel (0) target = $region13
    $region12: #{tokenized_base_forward.1} parent=1 // pred_region
      _
    $region13: #{tokenized_base_forward.1} parent=1 // pred_fallthru
      _
    // Predicated region
    $region14: #{tokenized_base_forward.1} parent=1 // pred_check
      _
    $region15: #{tokenized_base_forward.1} parent=1 // pred_check_branch
      %18 = sbr.rel (0) target = $region17
    $region16: #{tokenized_base_forward.1} parent=1 // pred_region
      _
    $region17: #{tokenized_base_forward.1} parent=1 // pred_fallthru
      _
    // Predicated region
    $region18: #{tokenized_base_forward.1} parent=1 // pred_check
      _
    $region19: #{tokenized_base_forward.1} parent=1 // pred_check_branch
      %20 = sbr.rel (0) target = $region21
    $region20: #{tokenized_base_forward.1} parent=1 // pred_region
      _
    $region21: #{tokenized_base_forward.1} parent=1 // pred_fallthru
      _
    %v22 = vld [vmem:[%s0] sm:$0xf]
    %v23 = vld [vmem:[%s0 + $0x4] sm:$0xf]
    %v24 = vld [vmem:[%s0 + $0x8] sm:$0xf]
    %v25 = vld [vmem:[%s0 + $0xc] sm:$0xf]
    %v26 = vld [vmem:[%s1] sm:$0xf]
    %v27 = vld [vmem:[%s1 + $0x4] sm:$0xf]
    %v28 = vld [vmem:[%s1 + $0x8] sm:$0xf]
    %v29 = vld [vmem:[%s1 + $0xc] sm:$0xf]
    %v30 = vld [vmem:[%s1 + $0x10] sm:$0xf]
    %v31 = vld [vmem:[%s1 + $0x14] sm:$0xf]
    %v32 = vld [vmem:[%s1 + $0x18] sm:$0xf]
    %v33 = vld [vmem:[%s1 + $0x1c] sm:$0xf]
    %v34 = vld [vmem:[%s1 + $0x20] sm:$0xf]
    %v35 = vld [vmem:[%s1 + $0x24] sm:$0xf]
    %v36 = vld [vmem:[%s1 + $0x28] sm:$0xf]
    %v37 = vld [vmem:[%s1 + $0x2c] sm:$0xf]
    %v38 = vld [vmem:[%s1 + $0x30] sm:$0xf]
    %v39 = vld [vmem:[%s1 + $0x34] sm:$0xf]
    %v40 = vld [vmem:[%s1 + $0x38] sm:$0xf]
    %v41 = vld [vmem:[%s1 + $0x3c] sm:$0xf]
    %v46 = vunpack.c.l.b16 %v22
    %v47 = vunpack.c.l.b16 %v23
    %v48 = vunpack.c.l.b16 %v24
    %v49 = vunpack.c.l.b16 %v25
    %v50 = vpack.c.b16 %v47, %v46
    %v51 = vpack.c.b16 %v49, %v48
    %v70 = vunpack.c.l.b16 %v26
    %v71 = vunpack.c.l.b16 %v27
    %v72 = vunpack.c.l.b16 %v28
    %v73 = vunpack.c.l.b16 %v29
    %v74 = vunpack.c.l.b16 %v30
    %v75 = vunpack.c.l.b16 %v31
    %v76 = vunpack.c.l.b16 %v32
    %v77 = vunpack.c.l.b16 %v33
    %v78 = vunpack.c.l.b16 %v34
    %v79 = vunpack.c.l.b16 %v35
    %v80 = vunpack.c.l.b16 %v36
    %v81 = vunpack.c.l.b16 %v37
    %v82 = vunpack.c.l.b16 %v38
    %v83 = vunpack.c.l.b16 %v39
    %v84 = vunpack.c.l.b16 %v40
    %v85 = vunpack.c.l.b16 %v41
    %v86 = vpack.c.b16 %v71, %v70
    %v87 = vpack.c.b16 %v73, %v72
    %v88 = vpack.c.b16 %v75, %v74
    %v89 = vpack.c.b16 %v77, %v76
    %v90 = vpack.c.b16 %v79, %v78
    %v91 = vpack.c.b16 %v81, %v80
    %v92 = vpack.c.b16 %v83, %v82
    %v93 = vpack.c.b16 %v85, %v84
    %102 = vmatprep.subr.bf16.mxu0 0
    %103 = vmatpush1.bf16.msra.mxu0 %v86
    %104 = vmatprep.subr.bf16.mxu0 0
    %105 = vmatpush1.bf16.msra.mxu0 %v87
    %106 = vmatprep.subr.bf16.mxu0 0
    %107 = vmatpush1.bf16.msra.mxu0 %v88
    %108 = vmatprep.subr.bf16.mxu0 0
    %109 = vmatpush1.bf16.msra.mxu0 %v89
    %110 = vmatprep.subr.bf16.mxu0 0
    %111 = vmatpush1.bf16.msra.mxu0 %v90
    %112 = vmatprep.subr.bf16.mxu0 0
    %113 = vmatpush1.bf16.msra.mxu0 %v91
    %114 = vmatprep.subr.bf16.mxu0 0
    %115 = vmatpush1.bf16.msra.mxu0 %v92
    %116 = vmatprep.subr.bf16.mxu0 0
    %117 = vmatpush1.bf16.msra.mxu0 %v93
    %118 = vmatprep.subr.bf16.mxu0 0
    %119 = vmatpush1.bf16.msra.mxu0 0
    %120 = vmatprep.subr.bf16.mxu0 0
    %121 = vmatpush1.bf16.msra.mxu0 0
    %122 = vmatprep.subr.bf16.mxu0 0
    %123 = vmatpush1.bf16.msra.mxu0 0
    %124 = vmatprep.subr.bf16.mxu0 0
    %125 = vmatpush1.bf16.msra.mxu0 0
    %126 = vmatprep.subr.bf16.mxu0 0
    %127 = vmatpush1.bf16.msra.mxu0 0
    %128 = vmatprep.subr.bf16.mxu0 0
    %129 = vmatpush1.bf16.msra.mxu0 0
    %130 = vmatprep.subr.bf16.mxu0 0
    %131 = vmatpush1.bf16.msra.mxu0 0
    %132 = vmatprep.subr.bf16.mxu0 0
    %133 = vmatpush1.bf16.msra.mxu0 0
    %134 = vmatprep.mubr.bf16.mxu0 0
    %135 = vmatmul.mubr.bf16.gmra.mrb[0].mxu0 %v50
    %v136 = vpop.f32.mrb[0].mxu0
    %v137 = vadd.f32 0.0, %v136
    %v138 = vpop.f32.mrb[0].mxu0
    %v139 = vpop.f32.mrb[0].mxu0
    %v140 = vadd.f32 0.0, %v139
    %v141 = vpop.f32.mrb[0].mxu0
    %142 = vmatprep.mubr.bf16.mxu0 0
    %143 = vmatmul.mubr.bf16.gmra.mrb[0].mxu0 %v51
    %v144 = vpop.f32.mrb[0].mxu0
    %v145 = vadd.f32 0.0, %v144
    %v146 = vpop.f32.mrb[0].mxu0
    %v147 = vpop.f32.mrb[0].mxu0
    %v148 = vadd.f32 0.0, %v147
    %v149 = vpop.f32.mrb[0].mxu0
    %150 = vdwg.mxu0
    %v151 = vld [vmem:[%s2] sm:$0xff]
    %v152 = vld [vmem:[%s2 + $0x8] sm:$0xff]
    %v153 = vadd.f32 %v137, %v151
    %v154 = vadd.f32 %v140, %v152
    %v155 = vadd.f32 %v145, %v151
    %v156 = vadd.f32 %v148, %v152
    %157 = vadd.xlane.f32.xlu0 %v153
    %v158 = vpop.xlane.xlu0 %157
    %159 = vadd.xlane.f32.xlu0 %v154
    %v160 = vpop.xlane.xlu0 %159
    %161 = vadd.xlane.f32.xlu0 %v155
    %v162 = vpop.xlane.xlu0 %161
    %163 = vadd.xlane.f32.xlu0 %v156
    %v164 = vpop.xlane.xlu0 %163
    %v165 = vrcp.pop 128.0
    %v166 = vmul.f32 %v158, %v165
    %v167 = vmul.f32 %v160, %v165
    %v168 = vmul.f32 %v162, %v165
    %v169 = vmul.f32 %v164, %v165
    %v170 = vsub.f32 %v153, %v166
    %v171 = vsub.f32 %v154, %v167
    %v172 = vsub.f32 %v155, %v168
    %v173 = vsub.f32 %v156, %v169
    %v174 = vmul.f32 %v170, %v170
    %v175 = vmul.f32 %v171, %v171
    %v176 = vmul.f32 %v172, %v172
    %v177 = vmul.f32 %v173, %v173
    %178 = vadd.xlane.f32.xlu0 %v174
    %v179 = vpop.xlane.xlu0 %178
    %180 = vadd.xlane.f32.xlu0 %v175
    %v181 = vpop.xlane.xlu0 %180
    %182 = vadd.xlane.f32.xlu0 %v176
    %v183 = vpop.xlane.xlu0 %182
    %184 = vadd.xlane.f32.xlu0 %v177
    %v185 = vpop.xlane.xlu0 %184
    %v186 = vmul.f32 %v179, %v165
    %v187 = vmul.f32 %v181, %v165
    %v188 = vmul.f32 %v183, %v165
    %v189 = vmul.f32 %v185, %v165
    %v190 = vadd.f32 %v186, 1e-05
    %v191 = vadd.f32 %v187, 1e-05
    %v192 = vadd.f32 %v188, 1e-05
    %v193 = vadd.f32 %v189, 1e-05
    %v194 = vrsqrt.pop %v190
    %v195 = vrsqrt.pop %v191
    %v196 = vrsqrt.pop %v192
    %v197 = vrsqrt.pop %v193
    %v198 = vmul.f32 %v170, %v194
    %v199 = vmul.f32 %v171, %v195
    %v200 = vmul.f32 %v172, %v196
    %v201 = vmul.f32 %v173, %v197
    %v202 = vld [vmem:[%s3] sm:$0x1]
    %v204 = vlaneseq
    %v205 = vshrl.u32 %v204, 7
    %v206 = vsub.s32 0, %v205
    %v207 = vrot.slane %v202, %v206
    %v209 = vmul.f32 %v198, %v207
    %v210 = vmul.f32 %v199, %v207
    %v211 = vmul.f32 %v200, %v207
    %v212 = vmul.f32 %v201, %v207
    %v213 = vld [vmem:[%s4] sm:$0x1]
    %v215 = vlaneseq
    %v216 = vshrl.u32 %v215, 7
    %v217 = vsub.s32 0, %v216
    %v218 = vrot.slane %v213, %v217
    %v220 = vadd.f32 %v209, %v218
    %v221 = vadd.f32 %v210, %v218
    %v222 = vadd.f32 %v211, %v218
    %v223 = vadd.f32 %v212, %v218
    %v224 = vpack.c.bf16 %v221, %v220
    %v225 = vpack.c.bf16 %v223, %v222
    %v228 = vunpack.c.l.b16 %v224
    %v229 = vunpack.c.h.b16 %v224
    %v230 = vunpack.c.l.b16 %v225
    %v231 = vunpack.c.h.b16 %v225
    %v232 = vpack.c.b16 %v228, %v228
    %v233 = vpack.c.b16 %v229, %v229
    %v234 = vpack.c.b16 %v230, %v230
    %v235 = vpack.c.b16 %v231, %v231
    %240 = vst [vmem:[#allocation2] sm:$0xf] %v232
    %241 = vst [vmem:[#allocation2 + $0x4] sm:$0xf] %v233
    %242 = vst [vmem:[#allocation2 + $0x8] sm:$0xf] %v234
    %243 = vst [vmem:[#allocation2 + $0xc] sm:$0xf] %v235
    // Predicated region
    $region22: #{tokenized_base_forward.1} parent=1 // pred_check
      _
    $region23: #{tokenized_base_forward.1} parent=1 // pred_check_branch
      %245 = sbr.rel (0) target = $region25
    $region24: #{tokenized_base_forward.1} parent=1 // pred_region
      %s247 = ssub.s32 256, 256
      %248 = vsyncadd [#allocation3], %s247
      %s249 = sshll.u32 [#allocation2], 4
      %s250 = int_to_ptr.vmem [resolvable:$true] %s249
      %255 = dma.vmem_to_hbm [thread:$0]  %s250, 256, %s5, [#allocation3], 64, 64, 4
    $region25: #{tokenized_base_forward.1} parent=1 // pred_fallthru
      _
    // Predicated region
    $region26: #{tokenized_base_forward.1} parent=1 // pred_check
      _
    $region27: #{tokenized_base_forward.1} parent=1 // pred_check_branch
      %257 = sbr.rel (0) target = $region29
    $region28: #{tokenized_base_forward.1} parent=1 // pred_region
      %258 = dma.done [#allocation3], 256
    $region29: #{tokenized_base_forward.1} parent=1 // pred_fallthru
      _
    %259 = vsyncpa [#allocation3], 1

</llo_original>
